<compile_context>
chip_gen: v7x
topology: tpu7x:2x2x1
jax: 0.10.0
libtpu: 0.0.40
codegen_flags: <defaults>
</compile_context>

<pallas_src>
import math
from typing import Any, NamedTuple

import jax
import jax.numpy as jnp
import numpy as np
from jax.experimental import pallas as pl
from jax.experimental.pallas import tpu as pltpu


def _round_up(x: int, m: int) -> int:
    return (x + m - 1) // m * m


# ---------------------------------------------------------------------------
# Hardware-gated tile caps (v7x has only 64 MiB VMEM per TensorCore)
# ---------------------------------------------------------------------------
def _tile_caps():
    vmem_bytes = None
    try:
        vmem_bytes = int(pltpu.get_tpu_info().vmem_capacity_bytes)
    except Exception:
        vmem_bytes = None  # fall back to the conservative (v7x-safe) config

    if vmem_bytes is not None and vmem_bytes > 64 * 1024 * 1024:
        # v5e / v6e: 128 MiB VMEM.  Large tiles amortize per-step overhead and
        # weight re-streaming; double-buffered footprint is still ~6-12 MiB.
        return {"tm_max": 512, "tn_max": 512, "tk_max": 1024,
                "vmem_limit": 64 * 1024 * 1024, "two_core": False}
    # v7x (64 MiB/TC, 2 TensorCores) or unknown: conservative tiles + limit.
    return {"tm_max": 256, "tn_max": 512, "tk_max": 512,
            "vmem_limit": 32 * 1024 * 1024,
            "two_core": vmem_bytes is not None}


# ---------------------------------------------------------------------------
# Kernels
# ---------------------------------------------------------------------------
def _final_layer_kernel_f32out(x_ref, w_ref, b_ref, o_ref):
    """f32 output: accumulate directly into the resident output block.

    Bias is folded into the k==0 init, so there is no epilogue at all.
    """
    k = pl.program_id(2)

    @pl.when(k == 0)
    def _init():
        o_ref[...] = jnp.broadcast_to(b_ref[...], o_ref.shape)

    o_ref[...] += jnp.dot(x_ref[...], w_ref[...],
                          preferred_element_type=jnp.float32)


def _final_layer_kernel_acc(x_ref, w_ref, b_ref, o_ref, acc_ref):
    """Non-f32 output: f32 VMEM accumulator, cast on the last K step."""
    k = pl.program_id(2)

    @pl.when(k == 0)
    def _init():
        acc_ref[...] = jnp.broadcast_to(b_ref[...], acc_ref.shape)

    acc_ref[...] += jnp.dot(x_ref[...], w_ref[...],
                            preferred_element_type=jnp.float32)

    @pl.when(k == pl.num_programs(2) - 1)
    def _finalize():
        o_ref[...] = acc_ref[...].astype(o_ref.dtype)


# ---------------------------------------------------------------------------
# One-time preprocessing: fold mask, pre-cast and pre-pad the constant params
# ---------------------------------------------------------------------------
class FinalLayerParams(NamedTuple):
    weight: jax.Array      # (W_pad, L_pad), compute_dtype, mask already folded
    bias: jax.Array        # (1, L_pad), float32
    out_features: int      # true L
    in_features: int       # true W
    tn: int                # N tile
    tk: int                # K tile
    compute_dtype: Any


def prepare_final_layer(weight, mask, bias, *, compute_dtype=jnp.float32,
                        tn_max=None, tk_max=None) -> FinalLayerParams:
    """Fold the constant autoregressive mask, cast and pad ONCE (init time)."""
    W, L = weight.shape
    caps = _tile_caps()
    tn_max = caps["tn_max"] if tn_max is None else tn_max
    tk_max = caps["tk_max"] if tk_max is None else tk_max

    # N: do not pad tiny latent dims up to 128 lanes — a full-dim block is
    # legal and avoids inflating the weight stream by 128/L.
    tn = L if L <= tn_max else tn_max
    L_pad = _round_up(L, tn)
    # K: same logic on the reduction axis (layer_width).
    tk = W if W <= tk_max else tk_max
    W_pad = _round_up(W, tk)

    masked_w = (weight * mask).astype(compute_dtype)
    masked_w = jnp.pad(masked_w, ((0, W_pad - W), (0, L_pad - L)))
    # Bias stays f32: negligible HBM bytes, keeps the epilogue exact on v5e.
    bias_p = jnp.pad(bias.astype(jnp.float32), (0, L_pad - L)).reshape(1, L_pad)
    return FinalLayerParams(masked_w, bias_p, L, W, tn, tk, compute_dtype)


# ---------------------------------------------------------------------------
# Per-call wrapper: cast+pad x only, build grid, call pallas_call
# ---------------------------------------------------------------------------
def final_layer_mask_forward(x, params: FinalLayerParams, *, tm_max=None):
    """x: (B, W) -> (B, L) == x @ (weight * mask) + bias."""
    B, W = x.shape
    if W != params.in_features:
        raise ValueError(f"x has {W} features, layer expects {params.in_features}")

    W_pad, L_pad = params.weight.shape
    tn, tk = params.tn, params.tk

    caps = _tile_caps()
    if tm_max is None:
        tm_max = caps["tm_max"]

    tm = min(tm_max, _round_up(B, 8))
    B_pad = _round_up(B, tm)
    grid_m = B_pad // tm
    grid_n = L_pad // tn
    grid_k = W_pad // tk

    # v7x has 2 TensorCores: if the parallel (i, j) grid has a single block and
    # the batch tile can be split, halve tm so the second core is not idle.
    if caps["two_core"] and grid_m * grid_n < 2 and tm >= 16:
        tm = max(8, _round_up(tm // 2, 8))
        B_pad = _round_up(B, tm)
        grid_m = B_pad // tm

    # Only x is cast + zero-padded per call (weight/bias were prepared once).
    x_p = jnp.pad(x.astype(params.compute_dtype),
                  ((0, B_pad - B), (0, W_pad - W)))

    out_dtype = x.dtype
    if out_dtype == jnp.float32:
        kernel = _final_layer_kernel_f32out
        scratch = []
    else:
        kernel = _final_layer_kernel_acc
        scratch = [pltpu.VMEM((tm, tn), jnp.float32)]

    out_p = pl.pallas_call(
        kernel,
        out_shape=jax.ShapeDtypeStruct((B_pad, L_pad), out_dtype),
        grid_spec=pltpu.PrefetchScalarGridSpec(
            num_scalar_prefetch=0,
            grid=(grid_m, grid_n, grid_k),
            in_specs=[
                pl.BlockSpec((tm, tk), lambda i, j, k: (i, k)),  # x
                pl.BlockSpec((tk, tn), lambda i, j, k: (k, j)),  # masked weight
                pl.BlockSpec((1, tn), lambda i, j, k: (0, j)),   # bias (f32)
            ],
            out_specs=pl.BlockSpec((tm, tn), lambda i, j, k: (i, j)),
            scratch_shapes=scratch,
        ),
        compiler_params=pltpu.CompilerParams(
            dimension_semantics=("parallel", "parallel", "arbitrary"),
            vmem_limit_bytes=caps["vmem_limit"],
        ),
    )(x_p, params.weight, params.bias)

    return out_p[:B, :params.out_features]


# ---------------------------------------------------------------------------
# Parameter / buffer construction (mirrors FinalLayerMask.__init__)
# ---------------------------------------------------------------------------
def make_params(key, latent_dim, layer_width, init_zeros=False):
    if init_zeros:
        weight = jnp.zeros((layer_width, latent_dim), jnp.float32)
    else:
        # kaiming_normal_ (fan_in mode, gain=sqrt(2)); fan_in = latent_dim
        std = math.sqrt(2.0 / latent_dim)
        weight = std * jax.random.normal(key, (layer_width, latent_dim),
                                         dtype=jnp.float32)
    bias = jnp.zeros((latent_dim,), jnp.float32)

    # Autoregressive mask — same loop semantics as the PyTorch __init__.
    # (latent_dim == 1 divides by zero, exactly as in the PyTorch module.)
    mask_np = np.ones((layer_width, latent_dim), np.float32)
    nodes_per_dim = layer_width / (latent_dim - 1)
    for layer_node in range(layer_width):
        hi = int(layer_node // nodes_per_dim)
        mask_np[layer_node, 0:hi + 1] = 0.0
    mask = jnp.asarray(mask_np)
    return weight, bias, mask


# ---------------------------------------------------------------------------
# Demo / self-check
# ---------------------------------------------------------------------------
if __name__ == "__main__":
    key = jax.random.PRNGKey(0)
    kx, kw, kx2, kw2 = jax.random.split(key, 4)

    # --- Case 1: module-sized shapes (latent_dim=8, layer_width=32, B=2) ---
    latent_dim, layer_width, batch = 8, 32, 2
    weight, bias, mask = make_params(kw, latent_dim, layer_width,
                                     init_zeros=False)
    x = jax.random.normal(kx, (batch, layer_width), dtype=jnp.float32)
    ref = x @ (weight * mask) + bias

    # Exact f32 path.
    params_f32 = prepare_final_layer(weight, mask, bias,
                                     compute_dtype=jnp.float32)
    out_f32 = jax.block_until_ready(final_layer_mask_forward(x, params_f32))
    np.testing.assert_allclose(np.asarray(out_f32), np.asarray(ref),
                               rtol=1e-5, atol=1e-5)

    # bf16 MXU path (pre-cast operands, f32 accumulation + f32 bias).
    params_bf16 = prepare_final_layer(weight, mask, bias,
                                      compute_dtype=jnp.bfloat16)
    out_bf16 = jax.block_until_ready(final_layer_mask_forward(x, params_bf16))
    np.testing.assert_allclose(np.asarray(out_bf16), np.asarray(ref),
                               rtol=5e-2, atol=5e-2)

    # --- Case 2: unaligned shapes (full-dim K/N blocks + M padding) ---
    latent_dim2, layer_width2, batch2 = 12, 300, 50
    weight2, bias2, mask2 = make_params(kw2, latent_dim2, layer_width2,
                                        init_zeros=False)
    x2 = jax.random.normal(kx2, (batch2, layer_width2), dtype=jnp.float32)
    ref2 = x2 @ (weight2 * mask2) + bias2
    params2 = prepare_final_layer(weight2, mask2, bias2)
    out2 = jax.block_until_ready(final_layer_mask_forward(x2, params2))
    np.testing.assert_allclose(np.asarray(out2), np.asarray(ref2),
                               rtol=1e-4, atol=1e-4)

    print("KERNEL_OK")
</pallas_src>

<mosaic_0001>
module attributes {stable_mosaic.version = 11 : i64} {
  func.func @_final_layer_kernel_f32out(%arg0: i32, %arg1: i32, %arg2: i32, %arg3: memref<8x32xf32, #tpu.memory_space<vmem>>, %arg4: memref<32x8xf32, #tpu.memory_space<vmem>>, %arg5: memref<1x8xf32, #tpu.memory_space<vmem>>, %arg6: memref<8x8xf32, #tpu.memory_space<vmem>>) attributes {dimension_semantics = [#tpu.dimension_semantics<parallel>, #tpu.dimension_semantics<parallel>, #tpu.dimension_semantics<arbitrary>], iteration_bounds = array<i64: 1, 1, 1>, scalar_prefetch = 0 : i64, scratch_operands = 0 : i64, tpu.core_type = #tpu.core_type<tc>, window_params = [{transform_indices = @transform_0, window_bounds = array<i64: 8, 32>}, {transform_indices = @transform_1, window_bounds = array<i64: 32, 8>}, {transform_indices = @transform_2, window_bounds = array<i64: 1, 8>}, {transform_indices = @transform_3, window_bounds = array<i64: 8, 8>}]} {
    %c0_i32 = arith.constant 0 : i32
    %0 = arith.cmpi eq, %arg2, %c0_i32 : i32
    %1 = arith.extui %0 : i1 to i32
    %c0_i32_0 = arith.constant 0 : i32
    %2 = arith.cmpi ne, %1, %c0_i32_0 : i32
    scf.if %2 {
      %c0_8 = arith.constant 0 : index
      %c0_9 = arith.constant 0 : index
      %9 = vector.load %arg5[%c0_8, %c0_9] : memref<1x8xf32, #tpu.memory_space<vmem>>, vector<1x8xf32>
      %10 = vector.shape_cast %9 : vector<1x8xf32> to vector<1x8xf32>
      %11 = vector.broadcast %10 : vector<1x8xf32> to vector<8x8xf32>
      %c0_10 = arith.constant 0 : index
      %c0_11 = arith.constant 0 : index
      %12 = vector.load %arg6[%c0_10, %c0_11] : memref<8x8xf32, #tpu.memory_space<vmem>>, vector<8x8xf32>
      tpu.vector_store %arg6[%c0_10, %c0_11], %11 {strides = array<i32>} : memref<8x8xf32, #tpu.memory_space<vmem>>, vector<8x8xf32>,
    } else {
    }
    %c0 = arith.constant 0 : index
    %c0_1 = arith.constant 0 : index
    %3 = vector.load %arg6[%c0, %c0_1] : memref<8x8xf32, #tpu.memory_space<vmem>>, vector<8x8xf32>
    %c0_2 = arith.constant 0 : index
    %c0_3 = arith.constant 0 : index
    %4 = vector.load %arg3[%c0_2, %c0_3] : memref<8x32xf32, #tpu.memory_space<vmem>>, vector<8x32xf32>
    %c0_4 = arith.constant 0 : index
    %c0_5 = arith.constant 0 : index
    %5 = vector.load %arg4[%c0_4, %c0_5] : memref<32x8xf32, #tpu.memory_space<vmem>>, vector<32x8xf32>
    %cst = arith.constant dense<0.000000e+00> : vector<8x8xf32>
    %6 = tpu.matmul %4, %5, %cst {dimension_numbers = #tpu.dot_dimension_numbers<[1], [0], [0], [1], [0, 0, 1, 1], [], []>} : vector<8x32xf32>, vector<32x8xf32>, vector<8x8xf32> -> vector<8x8xf32>
    %7 = arith.addf %3, %6 : vector<8x8xf32>
    %c0_6 = arith.constant 0 : index
    %c0_7 = arith.constant 0 : index
    %8 = vector.load %arg6[%c0_6, %c0_7] : memref<8x8xf32, #tpu.memory_space<vmem>>, vector<8x8xf32>
    tpu.vector_store %arg6[%c0_6, %c0_7], %7 {strides = array<i32>} : memref<8x8xf32, #tpu.memory_space<vmem>>, vector<8x8xf32>,
    return
  }
  func.func @transform_0(%arg0: i32, %arg1: i32, %arg2: i32) -> (i32, i32) {
    %c0_i32 = arith.constant 0 : i32
    return %arg0, %arg2 : i32, i32
  }
  func.func @transform_1(%arg0: i32, %arg1: i32, %arg2: i32) -> (i32, i32) {
    %c0_i32 = arith.constant 0 : i32
    return %arg2, %arg1 : i32, i32
  }
  func.func @transform_2(%arg0: i32, %arg1: i32, %arg2: i32) -> (i32, i32) {
    %c0_i32 = arith.constant 0 : i32
    %c0_i32_0 = arith.constant 0 : i32
    return %c0_i32, %arg1 : i32, i32
  }
  func.func @transform_3(%arg0: i32, %arg1: i32, %arg2: i32) -> (i32, i32) {
    %c0_i32 = arith.constant 0 : i32
    return %arg0, %arg1 : i32, i32
  }
}

</mosaic_0001>

<llo_original>
// kernel: tpu_custom_call.1
$region0: #{tpu_custom_call.1}
  #allocation0 [shape = 'u32[]', space=smem, size = 0x4, offset = 0x4, fixed_abs, tag = 'smem constant byte address 0x4 - core index']
  #allocation1 [shape = 'u32[144,128]{1,0:T(1,128)}', space=vmem, size = 0x12000, scoped, tag = 'internal scratch']
  %s0 = inlined_call_operand.vmem [shape: f32[8,32], index: 0, kind: input, shape index: {}]
  %s1 = inlined_call_operand.vmem [shape: f32[32,8], index: 1, kind: input, shape index: {}]
  %s2 = inlined_call_operand.vmem [shape: f32[1,8], index: 2, kind: input, shape index: {}]
  %s3 = inlined_call_operand.hbm [shape: f32[8,8], index: 3, kind: output, shape index: {}]
  %s4 = sld [smem:[#allocation0]]
  $region26: #{tpu_custom_call.1} parent=0
    _
  %s6 = ssub.s32 1, %s4
  %s7 = scalar_select 0, %s6, %s4
  $region1: #{tpu_custom_call.1} parent=0
    #allocation2 [shape = 'u8[4096]{0}', space=vmem, size = 0x1000, scoped, tag = 'output window, operand 0, single buffered']
    #allocation3 [shape = 's32[1]{0}', space=sflag, size = 0x4, scoped, tag = 'scoped memory for tpu_custom_call.1']
    %8 = vsyncpa [#allocation3], 0
    // Predicated region
    $region2: #{tpu_custom_call.1} parent=1 // pred_check
      _
    $region3: #{tpu_custom_call.1} parent=1 // pred_check_branch
      %10 = sbr.rel (0) target = $region5
    $region4: #{tpu_custom_call.1} parent=1 // pred_region
      _
    $region5: #{tpu_custom_call.1} parent=1 // pred_fallthru
      _
    // Predicated region
    $region6: #{tpu_custom_call.1} parent=1 // pred_check
      _
    $region7: #{tpu_custom_call.1} parent=1 // pred_check_branch
      %12 = sbr.rel (0) target = $region9
    $region8: #{tpu_custom_call.1} parent=1 // pred_region
      _
    $region9: #{tpu_custom_call.1} parent=1 // pred_fallthru
      _
    // Predicated region
    $region10: #{tpu_custom_call.1} parent=1 // pred_check
      _
    $region11: #{tpu_custom_call.1} parent=1 // pred_check_branch
      %14 = sbr.rel (0) target = $region13
    $region12: #{tpu_custom_call.1} parent=1 // pred_region
      _
    $region13: #{tpu_custom_call.1} parent=1 // pred_fallthru
      _
    %p15 = scmp.eq.s32.totalorder 0, 0
    // Predicated region
    $region14: #{tpu_custom_call.1} parent=1 // pred_check
      %p16 = pneg %p15
    $region15: #{tpu_custom_call.1} parent=1 // pred_check_branch
      %18 = sbr.rel (%p16) target = $region17
    $region16: #{tpu_custom_call.1} parent=1 // pred_region
      %v19 = vld [vmem:[%s2] sm:$0x1]
      %v21 = vlaneseq
      %v22 = vshrl.u32 %v21, 7
      %v23 = vsub.s32 0, %v22
      %v24 = vrot.slane %v19, %v23
      %vm26 = vcmask 64512
      %27 = vst.msk [vmem:[#allocation2] sm:$0xff] %vm26, %v24
    $region17: #{tpu_custom_call.1} parent=1 // pred_fallthru
      _
    %v28 = vld [vmem:[#allocation2] sm:$0xff]
    %v29 = vld [vmem:[%s0] sm:$0xff]
    %v30 = vld [vmem:[%s1] sm:$0xff]
    %v31 = vld [vmem:[%s1 + $0x8] sm:$0xff]
    %v32 = vld [vmem:[%s1 + $0x10] sm:$0xff]
    %v33 = vld [vmem:[%s1 + $0x18] sm:$0xff]
    %vm34 = vcmask 261120
    %v36 = vsel %vm34, %v29, 0
    %38 = vmatprep.subr.mxu0 0.0
    %39 = vmatpush1.msra.mxu0 %v30
    %40 = vmatprep.subr.mxu0 0.0
    %41 = vmatpush1.msra.mxu0 %v31
    %42 = vmatprep.subr.mxu0 0.0
    %43 = vmatpush1.msra.mxu0 %v32
    %44 = vmatprep.subr.mxu0 0.0
    %45 = vmatpush1.msra.mxu0 %v33
    %46 = vmatprep.subr.mxu0 0.0
    %47 = vmatpush1.msra.mxu0 0.0
    %48 = vmatprep.subr.mxu0 0.0
    %49 = vmatpush1.msra.mxu0 0.0
    %50 = vmatprep.subr.mxu0 0.0
    %51 = vmatpush1.msra.mxu0 0.0
    %52 = vmatprep.subr.mxu0 0.0
    %53 = vmatpush1.msra.mxu0 0.0
    %54 = vmatprep.subr.mxu0 0.0
    %55 = vmatpush1.msra.mxu0 0.0
    %56 = vmatprep.subr.mxu0 0.0
    %57 = vmatpush1.msra.mxu0 0.0
    %58 = vmatprep.subr.mxu0 0.0
    %59 = vmatpush1.msra.mxu0 0.0
    %60 = vmatprep.subr.mxu0 0.0
    %61 = vmatpush1.msra.mxu0 0.0
    %62 = vmatprep.subr.mxu0 0.0
    %63 = vmatpush1.msra.mxu0 0.0
    %64 = vmatprep.subr.mxu0 0.0
    %65 = vmatpush1.msra.mxu0 0.0
    %66 = vmatprep.subr.mxu0 0.0
    %67 = vmatpush1.msra.mxu0 0.0
    %68 = vmatprep.subr.mxu0 0.0
    %69 = vmatpush1.msra.mxu0 0.0
    %70 = vmatprep.subr.mxu0 0.0
    %71 = vmatpush1.msra.mxu0 0.0
    %72 = vmatprep.subr.mxu0 0.0
    %73 = vmatpush1.msra.mxu0 0.0
    %74 = vmatprep.subr.mxu0 0.0
    %75 = vmatpush1.msra.mxu0 0.0
    %76 = vmatprep.subr.mxu0 0.0
    %77 = vmatpush1.msra.mxu0 0.0
    %78 = vmatprep.subr.mxu0 0.0
    %79 = vmatpush1.msra.mxu0 0.0
    %80 = vmatprep.subr.mxu0 0.0
    %81 = vmatpush1.msra.mxu0 0.0
    %82 = vmatprep.subr.mxu0 0.0
    %83 = vmatpush1.msra.mxu0 0.0
    %84 = vmatprep.subr.mxu0 0.0
    %85 = vmatpush1.msra.mxu0 0.0
    %86 = vmatprep.subr.mxu0 0.0
    %87 = vmatpush1.msra.mxu0 0.0
    %88 = vmatprep.subr.mxu0 0.0
    %89 = vmatpush1.msra.mxu0 0.0
    %90 = vmatprep.subr.mxu0 0.0
    %91 = vmatpush1.msra.mxu0 0.0
    %92 = vmatprep.subr.mxu0 0.0
    %93 = vmatpush1.msra.mxu0 0.0
    %94 = vmatprep.subr.mxu0 0.0
    %95 = vmatpush1.msra.mxu0 0.0
    %96 = vmatprep.subr.mxu0 0.0
    %97 = vmatpush1.msra.mxu0 0.0
    %98 = vmatprep.subr.mxu0 0.0
    %99 = vmatpush1.msra.mxu0 0.0
    %100 = vmatprep.subr.mxu0 0.0
    %101 = vmatpush1.msra.mxu0 0.0
    %102 = vmatprep.mubr.f32.mxu0 0.0
    %103 = vmatmul.mubr.f32.gmra.mrb[0].mxu0 %v36
    %v104 = vpop.f32.mrb[0].mxu0
    %v105 = vadd.f32 0.0, %v104
    %v106 = vpop.f32.mrb[0].mxu0
    %107 = vdwg.mxu0
    %v108 = vadd.f32 %v28, %v105
    %vm109 = vcmask 64512
    %110 = vst.msk [vmem:[#allocation2] sm:$0xff] %vm109, %v108
    // Predicated region
    $region18: #{tpu_custom_call.1} parent=1 // pred_check
      _
    $region19: #{tpu_custom_call.1} parent=1 // pred_check_branch
      %112 = sbr.rel (0) target = $region21
    $region20: #{tpu_custom_call.1} parent=1 // pred_region
      %s114 = ssub.s32 128, 128
      %115 = vsyncadd [#allocation3], %s114
      %s117 = sshll.u32 [#allocation2], 4
      %s118 = int_to_ptr.vmem [resolvable:$true] %s117
      %120 = dma.vmem_to_hbm [thread:$0]  %s118, 128, %s3, [#allocation3]
    $region21: #{tpu_custom_call.1} parent=1 // pred_fallthru
      _
    // Predicated region
    $region22: #{tpu_custom_call.1} parent=1 // pred_check
      _
    $region23: #{tpu_custom_call.1} parent=1 // pred_check_branch
      %122 = sbr.rel (0) target = $region25
    $region24: #{tpu_custom_call.1} parent=1 // pred_region
      %123 = dma.done [#allocation3], 128
    $region25: #{tpu_custom_call.1} parent=1 // pred_fallthru
      _
    %124 = vsyncpa [#allocation3], 1

</llo_original>
